<compile_context>
chip_gen: v6e
topology: v6e:2x2x1
jax: 0.10.0
libtpu: 0.0.40
codegen_flags: <defaults>
</compile_context>

<pallas_src>
import functools

import jax
import jax.numpy as jnp
from jax.experimental import pallas as pl
from jax.experimental.pallas import tpu as pltpu


def _focal_loss_kernel(logits_ref, targets_ref, acc_ref, *, alpha, gamma,
                       ignore_index, n_pixels, pixel_tile):
    p = pl.program_id(1)

    @pl.when(p == 0)
    def _():
        acc_ref[...] = jnp.zeros_like(acc_ref)

    logits = logits_ref[...].astype(jnp.float32)      # (C, T): classes x pixels
    tgt = targets_ref[...]                            # (1, T) int32
    C, T = logits.shape

    # target logit via iota-compare (ignore_index never matches a class id)
    class_ids = jax.lax.broadcasted_iota(jnp.int32, (C, T), 0)
    target_logit = jnp.sum(jnp.where(class_ids == tgt, logits, 0.0),
                           axis=0, keepdims=True)     # (1, T)

    # numerically stable logsumexp over the class (sublane) axis
    m = jnp.max(logits, axis=0, keepdims=True)
    lse = m + jnp.log(jnp.sum(jnp.exp(logits - m), axis=0, keepdims=True))

    ce = lse - target_logit                           # (1, T)

    # validity: not ignore_index and not ragged-tail padding
    pix = p * pixel_tile + jax.lax.broadcasted_iota(jnp.int32, (1, T), 1)
    valid = (tgt != ignore_index) & (pix < n_pixels)

    # zero out invalid lanes and clamp fp noise (ce is mathematically >= 0)
    ce = jnp.maximum(jnp.where(valid, ce, 0.0), 0.0)
    pt = jnp.exp(-ce)
    one_minus_pt = jnp.maximum(1.0 - pt, 0.0)
    if gamma == 2.0:                                  # VPU mul, not EUP pow
        modulation = one_minus_pt * one_minus_pt
    elif gamma == 1.0:
        modulation = one_minus_pt
    elif gamma == 0.0:
        modulation = jnp.ones_like(one_minus_pt)
    else:
        modulation = one_minus_pt ** gamma
    focal = jnp.where(valid, alpha * modulation * ce, 0.0)

    # pure-VPU elementwise accumulation; cross-lane reduce happens in wrapper
    acc_ref[...] = acc_ref[...] + focal


def _pick_pixel_tile(num_classes, num_pixels, itemsize,
                     target_block_bytes=4 * 1024 * 1024, max_tile=65536):
    """Choose a pixel tile giving multi-MiB logits blocks, safe for all gens'
    default scoped VMEM (v5e 16 MiB / v6e 32 MiB / v7x 32 MiB) with double
    buffering."""
    t = target_block_bytes // max(1, num_classes * itemsize)
    t = max(128, min(max_tile, t))
    t = (t // 128) * 128
    return num_pixels if num_pixels <= t else t


def focal_loss(inputs, targets, *, alpha=1.0, gamma=2.0, size_average=True,
               ignore_index=255, pixel_tile=None):
    """inputs: (N, C, H, W) float logits (f32 or bf16); targets: (N, H, W) ints."""
    N, C, H, W = inputs.shape
    P = H * W

    logits = inputs.reshape(N, C, P)                  # free view, no transpose
    tgt = targets.reshape(N, 1, P).astype(jnp.int32)

    if pixel_tile is None:
        pixel_tile = _pick_pixel_tile(C, P, jnp.dtype(inputs.dtype).itemsize)
    pixel_tile = int(pixel_tile)
    if pixel_tile >= P:
        T = P                                         # single block per sample
    else:
        T = max(128, (pixel_tile // 128) * 128)       # lane-aligned tile
        if T >= P:
            T = P
    num_pixel_blocks = pl.cdiv(P, T)

    kernel = functools.partial(
        _focal_loss_kernel, alpha=float(alpha), gamma=float(gamma),
        ignore_index=int(ignore_index), n_pixels=P, pixel_tile=T)

    partials = pl.pallas_call(
        kernel,
        out_shape=jax.ShapeDtypeStruct((N, 1, T), jnp.float32),
        grid_spec=pltpu.PrefetchScalarGridSpec(
            num_scalar_prefetch=0,
            grid=(N, num_pixel_blocks),
            in_specs=[
                pl.BlockSpec((pl.Squeezed(), C, T), lambda n, p: (n, 0, p)),
                pl.BlockSpec((pl.Squeezed(), 1, T), lambda n, p: (n, 0, p)),
            ],
            out_specs=pl.BlockSpec((pl.Squeezed(), 1, T),
                                   lambda n, p: (n, 0, 0)),
        ),
        compiler_params=pltpu.CompilerParams(
            dimension_semantics=("parallel", "arbitrary")),
    )(logits, tgt)

    loss_sum = jnp.sum(partials)
    if size_average:
        # PyTorch: focal_loss.mean() over all N*H*W elements (ignored count too)
        return loss_sum / jnp.float32(N * P)
    return loss_sum


def _reference_focal_loss(inputs, targets, alpha=1.0, gamma=2.0,
                          size_average=True, ignore_index=255):
    N, C, H, W = inputs.shape
    x = jnp.transpose(inputs, (0, 2, 3, 1)).reshape(-1, C).astype(jnp.float32)
    t = targets.reshape(-1).astype(jnp.int32)
    lse = jax.nn.logsumexp(x, axis=-1)
    valid = t != ignore_index
    t_safe = jnp.where(valid, t, 0)
    tl = jnp.take_along_axis(x, t_safe[:, None], axis=-1)[:, 0]
    ce = jnp.where(valid, lse - tl, 0.0)
    pt = jnp.exp(-ce)
    fl = jnp.where(valid, alpha * (1.0 - pt) ** gamma * ce, 0.0)
    return fl.mean() if size_average else fl.sum()


if __name__ == "__main__":
    key = jax.random.PRNGKey(0)
    k1, k2, k3 = jax.random.split(key, 3)

    N, C, H, W = 2, 4, 16, 16
    inputs = jax.random.normal(k1, (N, C, H, W), dtype=jnp.float32)
    targets = jax.random.randint(k2, (N, H, W), 0, C, dtype=jnp.int32)
    ignore_mask = jax.random.bernoulli(k3, 0.1, (N, H, W))
    targets = jnp.where(ignore_mask, 255, targets)

    ref = _reference_focal_loss(inputs, targets)

    # default (single big tile per sample)
    out = focal_loss(inputs, targets, alpha=1.0, gamma=2.0,
                     size_average=True, ignore_index=255)
    out = jax.block_until_ready(out)
    assert jnp.allclose(out, ref, rtol=1e-5, atol=1e-6), (out, ref)

    # multi-block accumulation path (forced small tile)
    out_tiled = focal_loss(inputs, targets, pixel_tile=128)
    out_tiled = jax.block_until_ready(out_tiled)
    assert jnp.allclose(out_tiled, ref, rtol=1e-5, atol=1e-6), (out_tiled, ref)

    # sum reduction path
    out_sum = focal_loss(inputs, targets, size_average=False)
    ref_sum = _reference_focal_loss(inputs, targets, size_average=False)
    assert jnp.allclose(out_sum, ref_sum, rtol=1e-5, atol=1e-5), (out_sum, ref_sum)

    # ragged-tail path: P=320 with tile=128 -> 3 blocks, last one masked in-kernel
    H2, W2 = 16, 20
    inputs2 = jax.random.normal(k1, (N, C, H2, W2), dtype=jnp.float32)
    targets2 = jax.random.randint(k2, (N, H2, W2), 0, C, dtype=jnp.int32)
    out2 = focal_loss(inputs2, targets2, pixel_tile=128)
    out2 = jax.block_until_ready(out2)
    ref2 = _reference_focal_loss(inputs2, targets2)
    assert jnp.allclose(out2, ref2, rtol=1e-5, atol=1e-6), (out2, ref2)

    print("KERNEL_OK")
</pallas_src>

<mosaic_0001>
module attributes {stable_mosaic.version = 11 : i64} {
  func.func @_focal_loss_kernel(%arg0: i32, %arg1: i32, %arg2: memref<1x4x256xf32, #tpu.memory_space<vmem>>, %arg3: memref<1x1x256xi32, #tpu.memory_space<vmem>>, %arg4: memref<1x1x256xf32, #tpu.memory_space<vmem>>) attributes {dimension_semantics = [#tpu.dimension_semantics<parallel>, #tpu.dimension_semantics<arbitrary>], iteration_bounds = array<i64: 2, 1>, scalar_prefetch = 0 : i64, scratch_operands = 0 : i64, tpu.core_type = #tpu.core_type<tc>, window_params = [{transform_indices = @transform_0, window_bounds = array<i64: 1, 4, 256>}, {transform_indices = @transform_1, window_bounds = array<i64: 1, 1, 256>}, {transform_indices = @transform_2, window_bounds = array<i64: 1, 1, 256>}]} {
    %c0_i32 = arith.constant 0 : i32
    %0 = arith.cmpi eq, %arg1, %c0_i32 : i32
    %1 = arith.extui %0 : i1 to i32
    %c0_i32_0 = arith.constant 0 : i32
    %2 = arith.cmpi ne, %1, %c0_i32_0 : i32
    scf.if %2 {
      %cst_23 = arith.constant 0.000000e+00 : f32
      %56 = vector.broadcast %cst_23 : f32 to vector<1x256xf32>
      %c0_24 = arith.constant 0 : index
      %c0_25 = arith.constant 0 : index
      %c0_26 = arith.constant 0 : index
      %57 = vector.load %arg4[%c0_24, %c0_25, %c0_26] : memref<1x1x256xf32, #tpu.memory_space<vmem>>, vector<1x1x256xf32>
      %58 = vector.shape_cast %57 : vector<1x1x256xf32> to vector<1x256xf32>
      %59 = vector.shape_cast %56 : vector<1x256xf32> to vector<1x1x256xf32>
      tpu.vector_store %arg4[%c0_24, %c0_25, %c0_26], %59 {strides = array<i32>} : memref<1x1x256xf32, #tpu.memory_space<vmem>>, vector<1x1x256xf32>,
    } else {
    }
    %c0 = arith.constant 0 : index
    %c0_1 = arith.constant 0 : index
    %c0_2 = arith.constant 0 : index
    %3 = vector.load %arg2[%c0, %c0_1, %c0_2] : memref<1x4x256xf32, #tpu.memory_space<vmem>>, vector<1x4x256xf32>
    %4 = vector.shape_cast %3 : vector<1x4x256xf32> to vector<4x256xf32>
    %c0_3 = arith.constant 0 : index
    %c0_4 = arith.constant 0 : index
    %c0_5 = arith.constant 0 : index
    %5 = vector.load %arg3[%c0_3, %c0_4, %c0_5] : memref<1x1x256xi32, #tpu.memory_space<vmem>>, vector<1x1x256xi32>
    %6 = vector.shape_cast %5 : vector<1x1x256xi32> to vector<1x256xi32>
    %7 = tpu.iota {dimensions = array<i32: 0>} : vector<4x256xi32>
    %8 = vector.broadcast %6 : vector<1x256xi32> to vector<4x256xi32>
    %9 = arith.cmpi eq, %7, %8 : vector<4x256xi32>
    %cst = arith.constant 0.000000e+00 : f32
    %10 = vector.broadcast %cst : f32 to vector<4x256xf32>
    %11 = arith.select %9, %4, %10 : vector<4x256xi1>, vector<4x256xf32>
    %cst_6 = arith.constant dense<0.000000e+00> : vector<256xf32>
    %12 = vector.multi_reduction <add>, %11, %cst_6 [0] : vector<4x256xf32> to vector<256xf32>
    %13 = vector.shape_cast %12 : vector<256xf32> to vector<1x256xf32>
    %cst_7 = arith.constant dense<0xFF800000> : vector<256xf32>
    %14 = vector.multi_reduction <maximumf>, %4, %cst_7 [0] : vector<4x256xf32> to vector<256xf32>
    %15 = vector.shape_cast %14 : vector<256xf32> to vector<1x256xf32>
    %16 = vector.broadcast %15 : vector<1x256xf32> to vector<4x256xf32>
    %17 = arith.subf %4, %16 : vector<4x256xf32>
    %18 = math.exp %17 : vector<4x256xf32>
    %cst_8 = arith.constant dense<0.000000e+00> : vector<256xf32>
    %19 = vector.multi_reduction <add>, %18, %cst_8 [0] : vector<4x256xf32> to vector<256xf32>
    %20 = vector.shape_cast %19 : vector<256xf32> to vector<1x256xf32>
    %21 = math.log %20 : vector<1x256xf32>
    %22 = arith.addf %15, %21 : vector<1x256xf32>
    %23 = arith.subf %22, %13 : vector<1x256xf32>
    %c256_i32 = arith.constant 256 : i32
    %24 = arith.muli %arg1, %c256_i32 : i32
    %25 = tpu.iota {dimensions = array<i32: 1>} : vector<1x256xi32>
    %26 = vector.broadcast %24 : i32 to vector<1x256xi32>
    %27 = arith.addi %26, %25 : vector<1x256xi32>
    %c255_i32 = arith.constant 255 : i32
    %28 = vector.broadcast %c255_i32 : i32 to vector<1x256xi32>
    %29 = arith.cmpi ne, %6, %28 : vector<1x256xi32>
    %c256_i32_9 = arith.constant 256 : i32
    %30 = vector.broadcast %c256_i32_9 : i32 to vector<1x256xi32>
    %31 = arith.cmpi slt, %27, %30 : vector<1x256xi32>
    %32 = arith.andi %29, %31 : vector<1x256xi1>
    %cst_10 = arith.constant 0.000000e+00 : f32
    %33 = vector.broadcast %cst_10 : f32 to vector<1x256xf32>
    %34 = arith.select %32, %23, %33 : vector<1x256xi1>, vector<1x256xf32>
    %cst_11 = arith.constant 0.000000e+00 : f32
    %35 = vector.broadcast %cst_11 : f32 to vector<1x256xf32>
    %36 = arith.maximumf %34, %35 : vector<1x256xf32>
    %cst_12 = arith.constant 0.000000e+00 : f32
    %37 = vector.broadcast %cst_12 : f32 to vector<1x256xf32>
    %38 = arith.subf %37, %36 : vector<1x256xf32>
    %39 = math.exp %38 : vector<1x256xf32>
    %cst_13 = arith.constant 1.000000e+00 : f32
    %40 = vector.broadcast %cst_13 : f32 to vector<1x256xf32>
    %41 = arith.subf %40, %39 : vector<1x256xf32>
    %cst_14 = arith.constant 0.000000e+00 : f32
    %42 = vector.broadcast %cst_14 : f32 to vector<1x256xf32>
    %43 = arith.maximumf %41, %42 : vector<1x256xf32>
    %44 = arith.mulf %43, %43 : vector<1x256xf32>
    %cst_15 = arith.constant 1.000000e+00 : f32
    %45 = vector.broadcast %cst_15 : f32 to vector<1x256xf32>
    %46 = arith.mulf %45, %44 : vector<1x256xf32>
    %47 = arith.mulf %46, %36 : vector<1x256xf32>
    %cst_16 = arith.constant 0.000000e+00 : f32
    %48 = vector.broadcast %cst_16 : f32 to vector<1x256xf32>
    %49 = arith.select %32, %47, %48 : vector<1x256xi1>, vector<1x256xf32>
    %c0_17 = arith.constant 0 : index
    %c0_18 = arith.constant 0 : index
    %c0_19 = arith.constant 0 : index
    %50 = vector.load %arg4[%c0_17, %c0_18, %c0_19] : memref<1x1x256xf32, #tpu.memory_space<vmem>>, vector<1x1x256xf32>
    %51 = vector.shape_cast %50 : vector<1x1x256xf32> to vector<1x256xf32>
    %52 = arith.addf %51, %49 : vector<1x256xf32>
    %c0_20 = arith.constant 0 : index
    %c0_21 = arith.constant 0 : index
    %c0_22 = arith.constant 0 : index
    %53 = vector.load %arg4[%c0_20, %c0_21, %c0_22] : memref<1x1x256xf32, #tpu.memory_space<vmem>>, vector<1x1x256xf32>
    %54 = vector.shape_cast %53 : vector<1x1x256xf32> to vector<1x256xf32>
    %55 = vector.shape_cast %52 : vector<1x256xf32> to vector<1x1x256xf32>
    tpu.vector_store %arg4[%c0_20, %c0_21, %c0_22], %55 {strides = array<i32>} : memref<1x1x256xf32, #tpu.memory_space<vmem>>, vector<1x1x256xf32>,
    return
  }
  func.func @transform_0(%arg0: i32, %arg1: i32) -> (i32, i32, i32) {
    %c0_i32 = arith.constant 0 : i32
    %c0_i32_0 = arith.constant 0 : i32
    return %arg0, %c0_i32, %arg1 : i32, i32, i32
  }
  func.func @transform_1(%arg0: i32, %arg1: i32) -> (i32, i32, i32) {
    %c0_i32 = arith.constant 0 : i32
    %c0_i32_0 = arith.constant 0 : i32
    return %arg0, %c0_i32, %arg1 : i32, i32, i32
  }
  func.func @transform_2(%arg0: i32, %arg1: i32) -> (i32, i32, i32) {
    %c0_i32 = arith.constant 0 : i32
    %c0_i32_0 = arith.constant 0 : i32
    %c0_i32_1 = arith.constant 0 : i32
    return %arg0, %c0_i32, %c0_i32_0 : i32, i32, i32
  }
}

</mosaic_0001>

<llo_original>
// kernel: tpu_custom_call.1
$region0: #{tpu_custom_call.1}
  #allocation0 [shape = 'u32[]', space=smem, size = 0x4, offset = 0x4, fixed_abs, tag = 'smem constant byte address 0x4 - core index']
  #allocation1 [shape = 'u32[144,128]{1,0:T(1,128)}', space=vmem, size = 0x12000, scoped, tag = 'internal scratch']
  %s0 = inlined_call_operand.hbm [shape: f32[2,4,256], index: 0, kind: input, shape index: {}]
  %s1 = inlined_call_operand.hbm [shape: s32[2,1,256], index: 1, kind: input, shape index: {}]
  %s2 = inlined_call_operand.hbm [shape: f32[2,1,256], index: 2, kind: output, shape index: {}]
  %s3 = sld [smem:[#allocation0]]
  $region53: #{tpu_custom_call.1} parent=0
    _
  %s5 = ssub.s32 1, %s3
  %s6 = scalar_select 0, %s5, %s3
  $region1: #{tpu_custom_call.1} parent=0
    #allocation2 [shape = 'u8[8192]{0}', space=vmem, size = 0x2000, scoped, tag = 'input window, operand 0']
    #allocation3 [shape = 's32[2]{0}', space=sflag, size = 0x8, scoped, tag = 'scoped memory for tpu_custom_call.1']
    #allocation4 [shape = 's32[2]{0}', space=sflag, size = 0x8, scoped, tag = 'scoped memory for tpu_custom_call.1']
    #allocation5 [shape = 'u8[2048]{0}', space=vmem, size = 0x800, scoped, tag = 'input window, operand 1']
    #allocation6 [shape = 's32[2]{0}', space=sflag, size = 0x8, scoped, tag = 'scoped memory for tpu_custom_call.1']
    #allocation7 [shape = 'u8[2048]{0}', space=vmem, size = 0x800, scoped, tag = 'output window, operand 0']
    %7 = vsyncpa [#allocation3], 0
    %s8 = scalar_lea.sflag [#allocation3], 1
    %9 = vsyncpa %s8, 0
    %10 = vsyncpa [#allocation6], 0
    %s11 = scalar_lea.sflag [#allocation6], 1
    %12 = vsyncpa %s11, 0
    %13 = vsyncpa [#allocation4], 0
    %s14 = scalar_lea.sflag [#allocation4], 1
    %15 = vsyncpa %s14, 0
    loop: start=0, step=1, limit=4
    $region2: #{tpu_custom_call.1} parent=1 // loop_pre_header
      _
    $region3: #{tpu_custom_call.1} parent=1 // loop_header
      %s17 = sphi 0, %s21
      %p18 = scmp.ge.s32.totalorder %s17, 4
      %s24 = sphi 0, %s36
      %s25 = sphi 0, %s32
      %s26 = sphi 0, %s24
      %s27 = sphi 0, %s25
      %s28 = sphi 0, %s26
      %s29 = sphi 0, %s27
      %s41 = sphi 0, %s43
      %s44 = sphi 0, %s41
      %s45 = sphi 0, %s44
      %s61 = sphi 0, %s45
      %s69 = sphi 0, %s71
      %s72 = sphi 0, %s69
      %s73 = sphi 0, %s72
      %s89 = sphi 0, %s73
      %s95 = sphi 0, %s97
      %s98 = sphi 0, %s95
      %s99 = sphi 0, %s98
      %s115 = sphi 0, %s99
    $region4: #{tpu_custom_call.1} parent=1 // loop_header_branch
      %20 = sbr.rel (%p18) target = $region8
    $region5: #{tpu_custom_call.1} parent=1 // loop_body
      %s22 = ssub.s32 %s17, 1
      %s23 = ssub.s32 %s17, 2
      %s30 = sadd.s32 1, %s25
      %p31 = scmp.ge.s32.totalorder %s30, 1
      %s32 = scalar_select %p31, 0, %s30
      %s33 = sadd.s32 1, %s24
      %s34 = scalar_select %p31, %s33, %s24
      %p35 = scmp.ge.s32.totalorder %s34, 2
      %s36 = scalar_select %p35, 0, %s34
      %s37 = ssub.s32 %s24, %s36
      %s38 = ssub.s32 %s25, %s32
      %s39 = sor.u32 %s37, %s38
      %p40 = scmp.eq.s32.totalorder %s39, 0
      %s42 = sadd.s32 %s41, 1
      %s43 = scalar_select %p40, %s41, %s42
      %p46 = pneg %p40
      %p47 = scmp.eq.s32.totalorder %s17, 1
      %p48 = por %p46, %p47
      %p49 = scmp.ne.s32.totalorder %s41, %s44
      %p50 = scmp.eq.s32.totalorder %s17, 0
      %p51 = por %p49, %p50
      %p52 = scmp.ne.s32.totalorder %s41, %s44
      %p53 = scmp.eq.s32.totalorder %s22, 1
      %p54 = por %p52, %p53
      %p55 = scmp.ne.s32.totalorder %s44, %s45
      %p56 = scmp.eq.s32.totalorder %s22, 0
      %p57 = por %p55, %p56
      %p58 = scmp.ne.s32.totalorder %s44, %s45
      %p59 = scmp.eq.s32.totalorder %s23, 1
      %p60 = por %p58, %p59
      %p62 = scmp.ne.s32.totalorder %s45, %s61
      %p63 = scmp.eq.s32.totalorder %s23, 0
      %p64 = por %p62, %p63
      %s65 = ssub.s32 %s24, %s36
      %s66 = ssub.s32 %s25, %s32
      %s67 = sor.u32 %s65, %s66
      %p68 = scmp.eq.s32.totalorder %s67, 0
      %s70 = sadd.s32 %s69, 1
      %s71 = scalar_select %p68, %s69, %s70
      %p74 = pneg %p68
      %p75 = scmp.eq.s32.totalorder %s17, 1
      %p76 = por %p74, %p75
      %p77 = scmp.ne.s32.totalorder %s69, %s72
      %p78 = scmp.eq.s32.totalorder %s17, 0
      %p79 = por %p77, %p78
      %p80 = scmp.ne.s32.totalorder %s69, %s72
      %p81 = scmp.eq.s32.totalorder %s22, 1
      %p82 = por %p80, %p81
      %p83 = scmp.ne.s32.totalorder %s72, %s73
      %p84 = scmp.eq.s32.totalorder %s22, 0
      %p85 = por %p83, %p84
      %p86 = scmp.ne.s32.totalorder %s72, %s73
      %p87 = scmp.eq.s32.totalorder %s23, 1
      %p88 = por %p86, %p87
      %p90 = scmp.ne.s32.totalorder %s73, %s89
      %p91 = scmp.eq.s32.totalorder %s23, 0
      %p92 = por %p90, %p91
      %s93 = ssub.s32 %s24, %s36
      %p94 = scmp.eq.s32.totalorder %s93, 0
      %s96 = sadd.s32 %s95, 1
      %s97 = scalar_select %p94, %s95, %s96
      %p100 = pneg %p94
      %p101 = scmp.eq.s32.totalorder %s17, 1
      %p102 = por %p100, %p101
      %p103 = scmp.ne.s32.totalorder %s95, %s98
      %p104 = scmp.eq.s32.totalorder %s17, 0
      %p105 = por %p103, %p104
      %p106 = scmp.ne.s32.totalorder %s95, %s98
      %p107 = scmp.eq.s32.totalorder %s22, 1
      %p108 = por %p106, %p107
      %p109 = scmp.ne.s32.totalorder %s98, %s99
      %p110 = scmp.eq.s32.totalorder %s22, 0
      %p111 = por %p109, %p110
      %p112 = scmp.ne.s32.totalorder %s98, %s99
      %p113 = scmp.eq.s32.totalorder %s23, 1
      %p114 = por %p112, %p113
      %p116 = scmp.ne.s32.totalorder %s99, %s115
      %p117 = scmp.eq.s32.totalorder %s23, 0
      %p118 = por %p116, %p117
      %p119 = scmp.le.s32.totalorder 1, %s17
      %p120 = scmp.lt.s32.totalorder %s17, 3
      %p121 = pnand %p119, %p120
      %p122 = pneg %p121
      // Predicated region
      $region9: #{tpu_custom_call.1} parent=5 // pred_check
        _
      $region10: #{tpu_custom_call.1} parent=5 // pred_check_branch
        %124 = sbr.rel (%p121) target = $region12
      $region11: #{tpu_custom_call.1} parent=5 // pred_region
        %s125 = ssub.s32 %s17, 1
      $region12: #{tpu_custom_call.1} parent=5 // pred_fallthru
        _
      %p126 = scmp.lt.s32.totalorder %s17, 2
      // Predicated region
      $region13: #{tpu_custom_call.1} parent=5 // pred_check
        %p127 = pneg %p126
      $region14: #{tpu_custom_call.1} parent=5 // pred_check_branch
        %129 = sbr.rel (%p127) target = $region16
      $region15: #{tpu_custom_call.1} parent=5 // pred_region
        // Predicated region
        $region17: #{tpu_custom_call.1} parent=15 // pred_check
          %p130 = pneg %p51
        $region18: #{tpu_custom_call.1} parent=15 // pred_check_branch
          %132 = sbr.rel (%p130) target = $region20
        $region19: #{tpu_custom_call.1} parent=15 // pred_region
          %s133 = sand.u32 %s41, 1
          %s134 = scalar_lea.sflag [#allocation3], %s133
          %s135 = sand.u32 %s41, 1
          %s136 = smul.addr %s135, 8
          %s137 = scalar_lea.vmem [#allocation2], %s136
          %s138 = smul.u32 2, %s25
          %s140 = ssub.s32 128, 128
          %141 = vsyncadd %s134, %s140
          %s142 = smul.addr %s24, 2
          %s143 = sadd.s32 %s138, %s142
          %s144 = smul.addr %s143, 64
          %s145 = scalar_lea.hbm %s0, %s144
          %s147 = sshll.u32 %s137, 4
          %s148 = int_to_ptr.vmem [resolvable:$true] %s147
          %150 = dma.hbm_to_vmem [thread:$0]  %s145, 128, %s148, %s134
        $region20: #{tpu_custom_call.1} parent=15 // pred_fallthru
          _
        // Predicated region
        $region21: #{tpu_custom_call.1} parent=15 // pred_check
          %p151 = pneg %p79
        $region22: #{tpu_custom_call.1} parent=15 // pred_check_branch
          %153 = sbr.rel (%p151) target = $region24
        $region23: #{tpu_custom_call.1} parent=15 // pred_region
          %s154 = sand.u32 %s69, 1
          %s155 = scalar_lea.sflag [#allocation6], %s154
          %s156 = sand.u32 %s69, 1
          %s157 = smul.addr %s156, 2
          %s158 = scalar_lea.vmem [#allocation5], %s157
          %s159 = smul.u32 2, %s25
          %s161 = ssub.s32 32, 32
          %162 = vsyncadd %s155, %s161
          %s163 = smul.addr %s24, 2
          %s164 = sadd.s32 %s159, %s163
          %s165 = smul.addr %s164, 16
          %s166 = scalar_lea.hbm %s1, %s165
          %s168 = sshll.u32 %s158, 4
          %s169 = int_to_ptr.vmem [resolvable:$true] %s168
          %171 = dma.hbm_to_vmem [thread:$0]  %s166, 32, %s169, %s155
        $region24: #{tpu_custom_call.1} parent=15 // pred_fallthru
          _
      $region16: #{tpu_custom_call.1} parent=5 // pred_fallthru
        _
      %p172 = scmp.le.s32.totalorder 1, %s17
      %p173 = scmp.lt.s32.totalorder %s17, 3
      %p174 = pnand %p172, %p173
      %p175 = pneg %p174
      // Predicated region
      $region25: #{tpu_custom_call.1} parent=5 // pred_check
        _
      $region26: #{tpu_custom_call.1} parent=5 // pred_check_branch
        %177 = sbr.rel (%p174) target = $region28
      $region27: #{tpu_custom_call.1} parent=5 // pred_region
        %s178 = ssub.s32 %s17, 1
        %s179 = sand.u32 %s44, 1
        %s180 = scalar_lea.sflag [#allocation3], %s179
        %s181 = sand.u32 %s44, 1
        %s182 = smul.addr %s181, 8
        %s183 = scalar_lea.vmem [#allocation2], %s182
        // Predicated region
        $region29: #{tpu_custom_call.1} parent=27 // pred_check
          %p184 = pneg %p57
        $region30: #{tpu_custom_call.1} parent=27 // pred_check_branch
          %186 = sbr.rel (%p184) target = $region32
        $region31: #{tpu_custom_call.1} parent=27 // pred_region
          %187 = dma.done %s180, 128
        $region32: #{tpu_custom_call.1} parent=27 // pred_fallthru
          _
        %s188 = sand.u32 %s72, 1
        %s189 = scalar_lea.sflag [#allocation6], %s188
        %s190 = sand.u32 %s72, 1
        %s191 = smul.addr %s190, 2
        %s192 = scalar_lea.vmem [#allocation5], %s191
        // Predicated region
        $region33: #{tpu_custom_call.1} parent=27 // pred_check
          %p193 = pneg %p85
        $region34: #{tpu_custom_call.1} parent=27 // pred_check_branch
          %195 = sbr.rel (%p193) target = $region36
        $region35: #{tpu_custom_call.1} parent=27 // pred_region
          %196 = dma.done %s189, 32
        $region36: #{tpu_custom_call.1} parent=27 // pred_fallthru
          _
        %s197 = sand.u32 %s44, 1
        %s198 = scalar_lea.sflag [#allocation3], %s197
        %s199 = sand.u32 %s44, 1
        %s200 = smul.addr %s199, 8
        %s201 = scalar_lea.vmem [#allocation2], %s200
        %p202 = pneg %p57
        %p203 = pneg %p54
        %s204 = sand.u32 %s72, 1
        %s205 = scalar_lea.sflag [#allocation6], %s204
        %s206 = sand.u32 %s72, 1
        %s207 = smul.addr %s206, 2
        %s208 = scalar_lea.vmem [#allocation5], %s207
        %p209 = pneg %p85
        %p210 = pneg %p82
        %p211 = pneg %p111
        %p212 = pneg %p108
        %s213 = sand.u32 %s98, 1
        %s214 = scalar_lea.sflag [#allocation4], %s213
        %s215 = sand.u32 %s98, 1
        %s216 = smul.addr %s215, 2
        %s217 = scalar_lea.vmem [#allocation7], %s216
        %s218 = smul.u32 2, %s27
        %s219 = smul.u32 2, %s27
        %p220 = scmp.eq.s32.totalorder %s27, 0
        // Predicated region
        $region37: #{tpu_custom_call.1} parent=27 // pred_check
          %p221 = pneg %p220
        $region38: #{tpu_custom_call.1} parent=27 // pred_check_branch
          %223 = sbr.rel (%p221) target = $region40
        $region39: #{tpu_custom_call.1} parent=27 // pred_region
          %v224 = vlaneseq
          %vm225 = vcmp.ge.s32.totalorder %v224, 0
          %vm226 = vcmp.lt.s32.totalorder %v224, 256
          %vm227 = vmand %vm225, %vm226
          %228 = vst.msk [vmem:[%s217] sm:$0x3] %vm227, 0.0
        $region40: #{tpu_custom_call.1} parent=27 // pred_fallthru
          _
        %v229 = vld [vmem:[%s183] sm:$0xff]
        %v230 = vld [vmem:[%s192] sm:$0x3]
        %v231 = vlaneseq
        %v232 = vshrl.u32 %v231, 7
        %v233 = vlaneseq
        %v234 = vshrl.u32 %v233, 7
        %v235 = vsub.s32 0, %v234
        %v236 = vrot.slane %v230, %v235
        %v237 = vlaneseq
        %v238 = vshrl.u32 %v237, 7
        %v239 = vsub.s32 1, %v238
        %v240 = vrot.slane %v230, %v239
        %vm241 = vcmp.eq.s32.totalorder %v232, %v236
        %vm242 = vcmp.eq.s32.totalorder %v232, %v240
        %v244 = vcombine.high %v229, %v229
        %v246 = vsel %vm241, %v229, 0.0
        %v247 = vsel %vm242, %v244, 0.0
        %vm248 = vcmask 1043456
        %v249 = vsel %vm248, %v246, 0.0
        %v250 = vrot.slane %v249, 4
        %v251 = vadd.f32 %v249, %v250
        %v252 = vrot.slane %v251, 2
        %v253 = vadd.f32 %v251, %v252
        %v254 = vrot.slane %v253, 1
        %v255 = vadd.f32 %v253, %v254
        %v256 = vsel %vm248, %v247, 0.0
        %v257 = vrot.slane %v256, 4
        %v258 = vadd.f32 %v256, %v257
        %v259 = vrot.slane %v258, 2
        %v260 = vadd.f32 %v258, %v259
        %v261 = vrot.slane %v260, 1
        %v262 = vadd.f32 %v260, %v261
        %v263 = vsel %vm248, %v229, -inf
        %v264 = vrot.slane %v263, 4
        %v265 = vmax.f32 %v263, %v264
        %v266 = vrot.slane %v265, 2
        %v267 = vmax.f32 %v265, %v266
        %v268 = vrot.slane %v267, 1
        %v269 = vmax.f32 %v267, %v268
        %v270 = vsel %vm248, %v244, -inf
        %v271 = vrot.slane %v270, 4
        %v272 = vmax.f32 %v270, %v271
        %v273 = vrot.slane %v272, 2
        %v274 = vmax.f32 %v272, %v273
        %v275 = vrot.slane %v274, 1
        %v276 = vmax.f32 %v274, %v275
        %v279 = vcombine.low %v269, %v276
        %v281 = vsub.f32 %v229, %v279
        %v282 = vmul.f32 %v281, 1.442695
        %v283 = vpow.pop %v282
        %v285 = vcombine.high %v283, %v283
        %v287 = vsel %vm248, %v283, 0.0
        %v288 = vrot.slane %v287, 4
        %v289 = vadd.f32 %v287, %v288
        %v290 = vrot.slane %v289, 2
        %v291 = vadd.f32 %v289, %v290
        %v292 = vrot.slane %v291, 1
        %v293 = vadd.f32 %v291, %v292
        %v294 = vsel %vm248, %v285, 0.0
        %v295 = vrot.slane %v294, 4
        %v296 = vadd.f32 %v294, %v295
        %v297 = vrot.slane %v296, 2
        %v298 = vadd.f32 %v296, %v297
        %v299 = vrot.slane %v298, 1
        %v300 = vadd.f32 %v298, %v299
        %v301 = vlog2.pop %v293
        %v302 = vmul.f32 %v301, 0.6931472
        %v303 = vlog2.pop %v300
        %v304 = vmul.f32 %v303, 0.6931472
        %v305 = vadd.f32 %v269, %v302
        %v306 = vadd.f32 %v276, %v304
        %v307 = vsub.f32 %v305, %v255
        %v308 = vsub.f32 %v306, %v262
        %s309 = smul.u32 %s27, 256
        %v310 = vlaneseq
        %v311 = vand.u32 %v310, 127
        %v312 = vadd.s32 %v311, 128
        %v313 = vstv %s309
        %v314 = vadd.s32 %v313, %v311
        %v315 = vadd.s32 %v313, %v312
        %vm316 = vcmp.ne.s32.totalorder %v230, 255
        %vm317 = vcmp.lt.s32.totalorder %v314, 256
        %vm318 = vcmp.lt.s32.totalorder %v315, 256
        %v319 = vsel %vm317, 1, 0
        %v320 = vsel %vm318, 1, 0
        %v321 = vcombine.low %v319, %v320
        %v323 = vunpack.c.l.s4 1966171168
        %v324 = vunpack.c.0.s8 %v323
        %v325 = vlaneseq
        %v326 = vshrl.u32 %v325, 7
        %v327 = vsub.s32 %v324, %v326
        %v328 = vrot.slane %v321, %v327
        %v330 = vunpack.c.l.s4 1966171168
        %v331 = vunpack.c.0.s8 %v330
        %v332 = vlaneseq
        %v333 = vshrl.u32 %v332, 7
        %v334 = vsub.s32 %v331, %v333
        %v335 = vrot.slane %v328, %v334
        %vm336 = vcmp.ne.s32.totalorder %v335, 0
        %vm337 = vmand %vm316, %vm336
        %v340 = vcombine.low %v307, %v308
        %v342 = vunpack.c.l.s4 1966171168
        %v343 = vunpack.c.0.s8 %v342
        %v344 = vlaneseq
        %v345 = vshrl.u32 %v344, 7
        %v346 = vsub.s32 %v343, %v345
        %v347 = vrot.slane %v340, %v346
        %v349 = vunpack.c.l.s4 1966171168
        %v350 = vunpack.c.0.s8 %v349
        %v351 = vlaneseq
        %v352 = vshrl.u32 %v351, 7
        %v353 = vsub.s32 %v350, %v352
        %v354 = vrot.slane %v347, %v353
        %v356 = vsel %vm337, %v354, 0.0
        %v357 = vmax.f32 %v356, 0.0
        %v358 = vsub.f32 0.0, %v357
        %v359 = vmul.f32 %v358, 1.442695
        %v360 = vpow.pop %v359
        %v361 = vsub.f32 1.0, %v360
        %v362 = vmax.f32 %v361, 0.0
        %v363 = vmul.f32 %v362, %v362
        %v364 = vmul.f32 %v363, %v357
        %v365 = vsel %vm337, %v364, 0.0
        %v366 = vld [vmem:[%s217] sm:$0x3]
        %v367 = vadd.f32 %v366, %v365
        %v368 = vlaneseq
        %vm369 = vcmp.ge.s32.totalorder %v368, 0
        %vm370 = vcmp.lt.s32.totalorder %v368, 256
        %vm371 = vmand %vm369, %vm370
        %372 = vst.msk [vmem:[%s217] sm:$0x3] %vm371, %v367
        %s373 = sand.u32 %s98, 1
        %s374 = scalar_lea.sflag [#allocation4], %s373
        %s375 = sand.u32 %s98, 1
        %s376 = smul.addr %s375, 2
        %s377 = scalar_lea.vmem [#allocation7], %s376
        // Predicated region
        $region41: #{tpu_custom_call.1} parent=27 // pred_check
          %p378 = pneg %p108
        $region42: #{tpu_custom_call.1} parent=27 // pred_check_branch
          %380 = sbr.rel (%p378) target = $region44
        $region43: #{tpu_custom_call.1} parent=27 // pred_region
          %s382 = ssub.s32 32, 32
          %383 = vsyncadd %s374, %s382
          %s384 = smul.addr %s26, 2
          %s385 = smul.addr %s384, 16
          %s386 = scalar_lea.hbm %s2, %s385
          %s388 = sshll.u32 %s377, 4
          %s389 = int_to_ptr.vmem [resolvable:$true] %s388
          %391 = dma.vmem_to_hbm [thread:$0]  %s389, 32, %s386, %s374
        $region44: #{tpu_custom_call.1} parent=27 // pred_fallthru
          _
      $region28: #{tpu_custom_call.1} parent=5 // pred_fallthru
        _
      %p392 = scmp.le.s32.totalorder 2, %s17
      // Predicated region
      $region45: #{tpu_custom_call.1} parent=5 // pred_check
        %p393 = pneg %p392
      $region46: #{tpu_custom_call.1} parent=5 // pred_check_branch
        %395 = sbr.rel (%p393) target = $region48
      $region47: #{tpu_custom_call.1} parent=5 // pred_region
        %s396 = ssub.s32 %s17, 2
        // Predicated region
        $region49: #{tpu_custom_call.1} parent=47 // pred_check
          %p397 = pneg %p114
        $region50: #{tpu_custom_call.1} parent=47 // pred_check_branch
          %399 = sbr.rel (%p397) target = $region52
        $region51: #{tpu_custom_call.1} parent=47 // pred_region
          %s400 = sand.u32 %s99, 1
          %s401 = scalar_lea.sflag [#allocation4], %s400
          %s402 = sand.u32 %s99, 1
          %s403 = smul.addr %s402, 2
          %s404 = scalar_lea.vmem [#allocation7], %s403
          %405 = dma.done %s401, 32
        $region52: #{tpu_custom_call.1} parent=47 // pred_fallthru
          _
      $region48: #{tpu_custom_call.1} parent=5 // pred_fallthru
        _
    $region6: #{tpu_custom_call.1} parent=1 // loop_footer
      %s21 = sadd.s32 1, %s17
    $region7: #{tpu_custom_call.1} parent=1 // loop_footer_branch
      %16 = sbr.rel target = $region3
    $region8: #{tpu_custom_call.1} parent=1 // loop_exit
      _
    %406 = vsyncpa [#allocation3], 1
    %s407 = scalar_lea.sflag [#allocation3], 1
    %408 = vsyncpa %s407, 1
    %409 = vsyncpa [#allocation6], 1
    %s410 = scalar_lea.sflag [#allocation6], 1
    %411 = vsyncpa %s410, 1
    %412 = vsyncpa [#allocation4], 1
    %s413 = scalar_lea.sflag [#allocation4], 1
    %414 = vsyncpa %s413, 1

</llo_original>
